<compile_context>
chip_gen: v7x
topology: tpu7x:2x2x1
jax: 0.10.0
libtpu: 0.0.40
codegen_flags: <defaults>
</compile_context>

<pallas_src>
import jax
import jax.numpy as jnp
from jax.experimental import pallas as pl
from jax.experimental.pallas import tpu as pltpu

EPS = 1e-5
# Sized with v7x in mind (64 MiB physical / 32 MiB scoped VMEM); also safe on
# v5e / v6e.  Double-buffered (block_rows, D) x tiles fit easily at the
# default block_rows below.
VMEM_LIMIT_BYTES = 32 * 1024 * 1024
_HIGH = jax.lax.Precision.HIGHEST


def _round_up(n, m):
    return ((n + m - 1) // m) * m


# ----------------------------- kernels --------------------------------------


def _x_stats_kernel(mask_ref, x_ref, sum_ref, sq_ref):
    """Accumulate masked sum / sum-of-squares of x over batch tiles."""
    @pl.when(pl.program_id(0) == 0)
    def _init():
        sum_ref[...] = jnp.zeros_like(sum_ref)
        sq_ref[...] = jnp.zeros_like(sq_ref)

    x = x_ref[...]                       # (TB, D_in) f32
    m = mask_ref[...]                    # (1, TB) f32, 1.0 for real rows
    # Batch-axis reductions on the (otherwise idle) MXU instead of the XLU.
    sum_ref[...] += jnp.dot(m, x, preferred_element_type=jnp.float32,
                            precision=_HIGH)
    sq_ref[...] += jnp.dot(m, x * x, preferred_element_type=jnp.float32,
                           precision=_HIGH)


def _z2_stats_kernel(mask_ref, x_ref, w1_ref, b1_ref, w2_ref, b2_ref,
                     sum_ref, sq_ref):
    """Accumulate masked sum / sum-of-squares of z2 = L2(relu(L1'(x)))."""
    @pl.when(pl.program_id(0) == 0)
    def _init():
        sum_ref[...] = jnp.zeros_like(sum_ref)
        sq_ref[...] = jnp.zeros_like(sq_ref)

    x = x_ref[...].astype(jnp.bfloat16)                       # bf16 MXU operand
    h1 = jnp.dot(x, w1_ref[...],
                 preferred_element_type=jnp.float32) + b1_ref[...]
    h1 = jnp.maximum(h1, 0.0)
    z2 = jnp.dot(h1.astype(jnp.bfloat16), w2_ref[...],
                 preferred_element_type=jnp.float32) + b2_ref[...]

    m = mask_ref[...]
    sum_ref[...] += jnp.dot(m, z2, preferred_element_type=jnp.float32,
                            precision=_HIGH)
    sq_ref[...] += jnp.dot(m, z2 * z2, preferred_element_type=jnp.float32,
                           precision=_HIGH)


def _apply_kernel(x_ref, w1_ref, b1_ref, w2_ref, b2_ref, w3_ref, b3_ref, o_ref):
    """Per batch tile: x -> sigmoid(L3(relu(L2'(relu(L1'(x))))))."""
    x = x_ref[...].astype(jnp.bfloat16)
    h1 = jnp.dot(x, w1_ref[...],
                 preferred_element_type=jnp.float32) + b1_ref[...]
    h1 = jnp.maximum(h1, 0.0)
    h2 = jnp.dot(h1.astype(jnp.bfloat16), w2_ref[...],
                 preferred_element_type=jnp.float32) + b2_ref[...]
    h2 = jnp.maximum(h2, 0.0)
    z3 = jnp.dot(h2.astype(jnp.bfloat16), w3_ref[...],
                 preferred_element_type=jnp.float32) + b3_ref[...]
    o_ref[...] = jax.nn.sigmoid(z3).astype(o_ref.dtype)


# ----------------------------- wrapper ---------------------------------------


def mlp_wrapper_forward(x, params, *, block_rows=512):
    """x: (B, inputDim) float32.  params: dict from init_params()."""
    assert block_rows % 128 == 0, "block_rows must be a multiple of 128"
    B, d_in = x.shape
    w1, b1 = params["w1"], params["b1"]
    w2, b2 = params["w2"], params["b2"]
    w3, b3 = params["w3"], params["b3"]
    h1_dim = w1.shape[1]
    h2_dim = w2.shape[1]
    d_out = w3.shape[1]

    # --- batch tiling: pad B to a multiple of the tile, mask the tail -------
    tb = min(block_rows, _round_up(B, 8))
    b_pad = _round_up(B, tb)
    x_p = jnp.pad(x, ((0, b_pad - B), (0, 0))) if b_pad != B else x
    mask = (jnp.arange(b_pad) < B).astype(jnp.float32).reshape(1, b_pad)
    n_tiles = b_pad // tb

    cp_reduce = pltpu.CompilerParams(
        dimension_semantics=("arbitrary",),      # output accumulates over batch
        vmem_limit_bytes=VMEM_LIMIT_BYTES)
    cp_parallel = pltpu.CompilerParams(
        dimension_semantics=("parallel",),       # megacore sharding on v7x
        vmem_limit_bytes=VMEM_LIMIT_BYTES)

    mask_spec = pl.BlockSpec((1, tb), lambda i: (0, i))
    # x stream is double-buffered by BlockSpec; on v6e a deeper
    # pipeline_mode=pl.Buffered(3) could be used if DMA were exposed.
    x_spec = pl.BlockSpec((tb, d_in), lambda i: (i, 0))

    def resident(shape):                         # weights stay VMEM-resident
        return pl.BlockSpec(shape, lambda i: (0, 0))

    # --- phase 1: batch statistics of x --------------------------------------
    sum1, sq1 = pl.pallas_call(
        _x_stats_kernel,
        out_shape=(jax.ShapeDtypeStruct((1, d_in), jnp.float32),
                   jax.ShapeDtypeStruct((1, d_in), jnp.float32)),
        grid=(n_tiles,),
        in_specs=[mask_spec, x_spec],
        out_specs=(resident((1, d_in)), resident((1, d_in))),
        compiler_params=cp_reduce,
    )(mask, x_p)

    inv_b = 1.0 / B
    mu1 = sum1 * inv_b
    var1 = jnp.maximum(sq1 * inv_b - mu1 * mu1, 0.0)        # biased variance
    s1 = params["g1"] * jax.lax.rsqrt(var1 + EPS)
    t1 = params["be1"] - mu1 * s1
    # Fold BN1 into Linear1 (once per call): L1(BN1(x)) == x @ w1_eff + b1_eff
    w1_eff = (w1 * s1.T).astype(jnp.bfloat16)
    b1_eff = t1 @ w1 + b1                                    # stays f32

    w2_bf = w2.astype(jnp.bfloat16)

    # --- phase 2: batch statistics of z2 = L2(relu(L1'(x))) ------------------
    sum2, sq2 = pl.pallas_call(
        _z2_stats_kernel,
        out_shape=(jax.ShapeDtypeStruct((1, h2_dim), jnp.float32),
                   jax.ShapeDtypeStruct((1, h2_dim), jnp.float32)),
        grid=(n_tiles,),
        in_specs=[mask_spec, x_spec,
                  resident((d_in, h1_dim)), resident((1, h1_dim)),
                  resident((h1_dim, h2_dim)), resident((1, h2_dim))],
        out_specs=(resident((1, h2_dim)), resident((1, h2_dim))),
        compiler_params=cp_reduce,
    )(mask, x_p, w1_eff, b1_eff, w2_bf, b2)

    mu2 = sum2 * inv_b
    var2 = jnp.maximum(sq2 * inv_b - mu2 * mu2, 0.0)
    s2 = params["g2"] * jax.lax.rsqrt(var2 + EPS)
    t2 = params["be2"] - mu2 * s2
    # Fold BN2 into Linear2: BN2(h1 @ w2 + b2) == h1 @ w2_eff + b2_eff
    w2_eff = (w2 * s2).astype(jnp.bfloat16)
    b2_eff = b2 * s2 + t2
    w3_bf = w3.astype(jnp.bfloat16)

    # --- phase 3: apply -------------------------------------------------------
    # NOTE: the (tb, d_out) output is not lane-dense for d_out < 128; padding it
    # to 128 lanes would multiply output HBM bytes by 128/d_out, which would
    # exceed the x read stream at these feature widths, so it stays narrow.
    out = pl.pallas_call(
        _apply_kernel,
        out_shape=jax.ShapeDtypeStruct((b_pad, d_out), jnp.float32),
        grid=(n_tiles,),
        in_specs=[x_spec,
                  resident((d_in, h1_dim)), resident((1, h1_dim)),
                  resident((h1_dim, h2_dim)), resident((1, h2_dim)),
                  resident((h2_dim, d_out)), resident((1, d_out))],
        out_specs=pl.BlockSpec((tb, d_out), lambda i: (i, 0)),
        compiler_params=cp_parallel,
    )(x_p, w1_eff, b1_eff, w2_eff, b2_eff, w3_bf, b3)

    return out[:B]


# ----------------------------- params & reference ----------------------------


def init_params(key, input_dim, output_dim, hidden1, hidden2):
    """Deterministic synthetic init (PyTorch-like uniform ranges)."""
    ks = jax.random.split(key, 3)

    def linear(k, fan_in, fan_out):
        bound = 1.0 / jnp.sqrt(fan_in)
        kw, kb = jax.random.split(k)
        # stored as (in, out) so the kernel does x @ W
        w = jax.random.uniform(kw, (fan_in, fan_out), jnp.float32, -bound, bound)
        b = jax.random.uniform(kb, (1, fan_out), jnp.float32, -bound, bound)
        return w, b

    w1, b1 = linear(ks[0], input_dim, hidden1)
    w2, b2 = linear(ks[1], hidden1, hidden2)
    w3, b3 = linear(ks[2], hidden2, output_dim)

    return {
        # BatchNorm1d affine params (PyTorch init: gamma=1, beta=0)
        "g1": jnp.ones((1, input_dim), jnp.float32),
        "be1": jnp.zeros((1, input_dim), jnp.float32),
        "g2": jnp.ones((1, hidden2), jnp.float32),
        "be2": jnp.zeros((1, hidden2), jnp.float32),
        "w1": w1, "b1": b1,
        "w2": w2, "b2": b2,
        "w3": w3, "b3": b3,
    }


def mlp_wrapper_reference(x, params):
    """Pure-JAX f32 reference mirroring the PyTorch forward (training-mode BN)."""
    x = x.astype(jnp.float32)
    mu1 = jnp.mean(x, axis=0, keepdims=True)
    var1 = jnp.mean((x - mu1) ** 2, axis=0, keepdims=True)
    xn = (x - mu1) * jax.lax.rsqrt(var1 + EPS) * params["g1"] + params["be1"]
    h1 = jnp.maximum(xn @ params["w1"] + params["b1"], 0.0)
    z2 = h1 @ params["w2"] + params["b2"]
    mu2 = jnp.mean(z2, axis=0, keepdims=True)
    var2 = jnp.mean((z2 - mu2) ** 2, axis=0, keepdims=True)
    z2n = (z2 - mu2) * jax.lax.rsqrt(var2 + EPS) * params["g2"] + params["be2"]
    h2 = jnp.maximum(z2n, 0.0)
    return jax.nn.sigmoid(h2 @ params["w3"] + params["b3"])


if __name__ == "__main__":
    key = jax.random.PRNGKey(0)
    k_x, k_p = jax.random.split(key)

    # Toy shapes consistent with the module.  NOTE: at these sizes per-call
    # launch overhead dominates; the tiling / bf16 / megacore choices above
    # only pay off at large batch sizes (they are harmless no-ops here).
    B, input_dim, hidden1, hidden2, output_dim = 8, 16, 32, 32, 8

    x = jax.random.normal(k_x, (B, input_dim), jnp.float32)
    params = init_params(k_p, input_dim, output_dim, hidden1, hidden2)

    y = mlp_wrapper_forward(x, params)
    jax.block_until_ready(y)

    y_ref = mlp_wrapper_reference(x, params)
    assert y.shape == (B, output_dim)
    assert bool(jnp.all((y >= 0.0) & (y <= 1.0)))
    max_err = float(jnp.max(jnp.abs(y - y_ref)))
    assert max_err < 5e-2, max_err  # bf16-matmul / f32-accumulate tolerance
    print("KERNEL_OK")
</pallas_src>

<mosaic_0001>
module attributes {stable_mosaic.version = 11 : i64} {
  func.func @_x_stats_kernel(%arg0: i32, %arg1: memref<1x8xf32, #tpu.memory_space<vmem>>, %arg2: memref<8x16xf32, #tpu.memory_space<vmem>>, %arg3: memref<1x16xf32, #tpu.memory_space<vmem>>, %arg4: memref<1x16xf32, #tpu.memory_space<vmem>>) attributes {dimension_semantics = [#tpu.dimension_semantics<arbitrary>], iteration_bounds = array<i64: 1>, scalar_prefetch = 0 : i64, scratch_operands = 0 : i64, tpu.core_type = #tpu.core_type<tc>, window_params = [{transform_indices = @transform_0, window_bounds = array<i64: 1, 8>}, {transform_indices = @transform_1, window_bounds = array<i64: 8, 16>}, {pipeline_mode = #tpu.pipeline_mode<synchronous>, transform_indices = @transform_2, window_bounds = array<i64: 1, 16>}, {pipeline_mode = #tpu.pipeline_mode<synchronous>, transform_indices = @transform_3, window_bounds = array<i64: 1, 16>}]} {
    %c0_i32 = arith.constant 0 : i32
    %0 = arith.cmpi eq, %arg0, %c0_i32 : i32
    %1 = arith.extui %0 : i1 to i32
    %c0_i32_0 = arith.constant 0 : i32
    %2 = arith.cmpi ne, %1, %c0_i32_0 : i32
    scf.if %2 {
      %cst_13 = arith.constant 0.000000e+00 : f32
      %14 = vector.broadcast %cst_13 : f32 to vector<1x16xf32>
      %c0_14 = arith.constant 0 : index
      %c0_15 = arith.constant 0 : index
      %15 = vector.load %arg3[%c0_14, %c0_15] : memref<1x16xf32, #tpu.memory_space<vmem>>, vector<1x16xf32>
      tpu.vector_store %arg3[%c0_14, %c0_15], %14 {strides = array<i32>} : memref<1x16xf32, #tpu.memory_space<vmem>>, vector<1x16xf32>,
      %cst_16 = arith.constant 0.000000e+00 : f32
      %16 = vector.broadcast %cst_16 : f32 to vector<1x16xf32>
      %c0_17 = arith.constant 0 : index
      %c0_18 = arith.constant 0 : index
      %17 = vector.load %arg4[%c0_17, %c0_18] : memref<1x16xf32, #tpu.memory_space<vmem>>, vector<1x16xf32>
      tpu.vector_store %arg4[%c0_17, %c0_18], %16 {strides = array<i32>} : memref<1x16xf32, #tpu.memory_space<vmem>>, vector<1x16xf32>,
    } else {
    }
    %c0 = arith.constant 0 : index
    %c0_1 = arith.constant 0 : index
    %3 = vector.load %arg2[%c0, %c0_1] : memref<8x16xf32, #tpu.memory_space<vmem>>, vector<8x16xf32>
    %c0_2 = arith.constant 0 : index
    %c0_3 = arith.constant 0 : index
    %4 = vector.load %arg1[%c0_2, %c0_3] : memref<1x8xf32, #tpu.memory_space<vmem>>, vector<1x8xf32>
    %c0_4 = arith.constant 0 : index
    %c0_5 = arith.constant 0 : index
    %5 = vector.load %arg3[%c0_4, %c0_5] : memref<1x16xf32, #tpu.memory_space<vmem>>, vector<1x16xf32>
    %cst = arith.constant dense<0.000000e+00> : vector<1x16xf32>
    %6 = tpu.matmul %4, %3, %cst {dimension_numbers = #tpu.dot_dimension_numbers<[1], [0], [0], [1], [0, 0, 1, 1], [], []>, precision = #tpu.contract_precision<fp32>} : vector<1x8xf32>, vector<8x16xf32>, vector<1x16xf32> -> vector<1x16xf32>
    %7 = arith.addf %5, %6 : vector<1x16xf32>
    %c0_6 = arith.constant 0 : index
    %c0_7 = arith.constant 0 : index
    %8 = vector.load %arg3[%c0_6, %c0_7] : memref<1x16xf32, #tpu.memory_space<vmem>>, vector<1x16xf32>
    tpu.vector_store %arg3[%c0_6, %c0_7], %7 {strides = array<i32>} : memref<1x16xf32, #tpu.memory_space<vmem>>, vector<1x16xf32>,
    %c0_8 = arith.constant 0 : index
    %c0_9 = arith.constant 0 : index
    %9 = vector.load %arg4[%c0_8, %c0_9] : memref<1x16xf32, #tpu.memory_space<vmem>>, vector<1x16xf32>
    %10 = arith.mulf %3, %3 : vector<8x16xf32>
    %cst_10 = arith.constant dense<0.000000e+00> : vector<1x16xf32>
    %11 = tpu.matmul %4, %10, %cst_10 {dimension_numbers = #tpu.dot_dimension_numbers<[1], [0], [0], [1], [0, 0, 1, 1], [], []>, precision = #tpu.contract_precision<fp32>} : vector<1x8xf32>, vector<8x16xf32>, vector<1x16xf32> -> vector<1x16xf32>
    %12 = arith.addf %9, %11 : vector<1x16xf32>
    %c0_11 = arith.constant 0 : index
    %c0_12 = arith.constant 0 : index
    %13 = vector.load %arg4[%c0_11, %c0_12] : memref<1x16xf32, #tpu.memory_space<vmem>>, vector<1x16xf32>
    tpu.vector_store %arg4[%c0_11, %c0_12], %12 {strides = array<i32>} : memref<1x16xf32, #tpu.memory_space<vmem>>, vector<1x16xf32>,
    return
  }
  func.func @transform_0(%arg0: i32) -> (i32, i32) {
    %c0_i32 = arith.constant 0 : i32
    %c0_i32_0 = arith.constant 0 : i32
    return %c0_i32, %arg0 : i32, i32
  }
  func.func @transform_1(%arg0: i32) -> (i32, i32) {
    %c0_i32 = arith.constant 0 : i32
    %c0_i32_0 = arith.constant 0 : i32
    return %arg0, %c0_i32 : i32, i32
  }
  func.func @transform_2(%arg0: i32) -> (i32, i32) {
    %c0_i32 = arith.constant 0 : i32
    %c0_i32_0 = arith.constant 0 : i32
    %c0_i32_1 = arith.constant 0 : i32
    return %c0_i32, %c0_i32_0 : i32, i32
  }
  func.func @transform_3(%arg0: i32) -> (i32, i32) {
    %c0_i32 = arith.constant 0 : i32
    %c0_i32_0 = arith.constant 0 : i32
    %c0_i32_1 = arith.constant 0 : i32
    return %c0_i32, %c0_i32_0 : i32, i32
  }
}

</mosaic_0001>

<llo_original>
// kernel: tpu_custom_call.1
$region0: #{tpu_custom_call.1}
  #allocation0 [shape = 'u32[]', space=smem, size = 0x4, offset = 0x4, fixed_abs, tag = 'smem constant byte address 0x4 - core index']
  #allocation1 [shape = 'u32[144,128]{1,0:T(1,128)}', space=vmem, size = 0x12000, scoped, tag = 'internal scratch']
  %s0 = inlined_call_operand.hbm [shape: f32[1,8], index: 0, kind: input, shape index: {}]
  %s1 = inlined_call_operand.hbm [shape: f32[8,16], index: 1, kind: input, shape index: {}]
  %s2 = inlined_call_operand.hbm [shape: f32[1,16], index: 2, kind: output, shape index: {0}]
  %s3 = inlined_call_operand.hbm [shape: f32[1,16], index: 3, kind: output, shape index: {1}]
  %4 = xla_tuple %s2, %s3
  %s5 = sld [smem:[#allocation0]]
  $region38: #{tpu_custom_call.1} parent=0
    _
  %s7 = ssub.s32 1, %s5
  %s8 = scalar_select 0, %s7, %s5
  $region1: #{tpu_custom_call.1} parent=0
    #allocation2 [shape = 'u8[512]{0}', space=vmem, size = 0x400, scoped, tag = 'input window, operand 0, single buffered']
    #allocation3 [shape = 's32[1]{0}', space=sflag, size = 0x4, scoped, tag = 'scoped memory for tpu_custom_call.1']
    #allocation4 [shape = 's32[1]{0}', space=sflag, size = 0x4, scoped, tag = 'scoped memory for tpu_custom_call.1']
    #allocation5 [shape = 'u8[4096]{0}', space=vmem, size = 0x1000, scoped, tag = 'input window, operand 1, single buffered']
    #allocation6 [shape = 's32[1]{0}', space=sflag, size = 0x4, scoped, tag = 'scoped memory for tpu_custom_call.1']
    #allocation7 [shape = 'u8[512]{0}', space=vmem, size = 0x400, scoped, tag = 'output window, operand 0, single buffered']
    #allocation8 [shape = 'u8[512]{0}', space=vmem, size = 0x400, scoped, tag = 'output window, operand 1, single buffered']
    #allocation9 [shape = 's32[1]{0}', space=sflag, size = 0x4, scoped, tag = 'scoped memory for tpu_custom_call.1']
    %9 = vsyncpa [#allocation3], 0
    %10 = vsyncpa [#allocation6], 0
    %11 = vsyncpa [#allocation4], 0
    %12 = vsyncpa [#allocation9], 0
    // Predicated region
    $region2: #{tpu_custom_call.1} parent=1 // pred_check
      _
    $region3: #{tpu_custom_call.1} parent=1 // pred_check_branch
      %14 = sbr.rel (0) target = $region5
    $region4: #{tpu_custom_call.1} parent=1 // pred_region
      %s16 = ssub.s32 16, 16
      %17 = vsyncadd [#allocation3], %s16
      %s19 = sshll.u32 [#allocation2], 4
      %s20 = int_to_ptr.vmem [resolvable:$true] %s19
      %22 = dma.hbm_to_vmem [thread:$0]  %s0, 16, %s20, [#allocation3]
    $region5: #{tpu_custom_call.1} parent=1 // pred_fallthru
      _
    // Predicated region
    $region6: #{tpu_custom_call.1} parent=1 // pred_check
      _
    $region7: #{tpu_custom_call.1} parent=1 // pred_check_branch
      %24 = sbr.rel (0) target = $region9
    $region8: #{tpu_custom_call.1} parent=1 // pred_region
      %s26 = ssub.s32 128, 128
      %27 = vsyncadd [#allocation6], %s26
      %s29 = sshll.u32 [#allocation5], 4
      %s30 = int_to_ptr.vmem [resolvable:$true] %s29
      %32 = dma.hbm_to_vmem [thread:$0]  %s1, 128, %s30, [#allocation6]
    $region9: #{tpu_custom_call.1} parent=1 // pred_fallthru
      _
    // Predicated region
    $region10: #{tpu_custom_call.1} parent=1 // pred_check
      _
    $region11: #{tpu_custom_call.1} parent=1 // pred_check_branch
      %34 = sbr.rel (0) target = $region13
    $region12: #{tpu_custom_call.1} parent=1 // pred_region
      %35 = dma.done [#allocation3], 16
    $region13: #{tpu_custom_call.1} parent=1 // pred_fallthru
      _
    // Predicated region
    $region14: #{tpu_custom_call.1} parent=1 // pred_check
      _
    $region15: #{tpu_custom_call.1} parent=1 // pred_check_branch
      %37 = sbr.rel (0) target = $region17
    $region16: #{tpu_custom_call.1} parent=1 // pred_region
      %38 = dma.done [#allocation6], 128
    $region17: #{tpu_custom_call.1} parent=1 // pred_fallthru
      _
    %p39 = scmp.eq.s32.totalorder 0, 0
    // Predicated region
    $region18: #{tpu_custom_call.1} parent=1 // pred_check
      %p40 = pneg %p39
    $region19: #{tpu_custom_call.1} parent=1 // pred_check_branch
      %42 = sbr.rel (%p40) target = $region21
    $region20: #{tpu_custom_call.1} parent=1 // pred_region
      %vm43 = vcmask 122880
      %44 = vst.msk [vmem:[#allocation7] sm:$0x1] %vm43, 0.0
      %45 = vst.msk [vmem:[#allocation8] sm:$0x1] %vm43, 0.0
    $region21: #{tpu_custom_call.1} parent=1 // pred_fallthru
      _
    %v46 = vld [vmem:[#allocation5] sm:$0xff]
    %v47 = vld [vmem:[#allocation2] sm:$0x1]
    %v48 = vld [vmem:[#allocation7] sm:$0x1]
    %vm49 = vcmask 64512
    %v51 = vsel %vm49, %v47, 0
    %53 = vmatprep.subr.mxu0 0.0
    %v54 = vand.u32 %v46, 4294901760
    %55 = vmatpush1.msra.mxu0 %v54
    %56 = vmatprep.subr.mxu0 0.0
    %57 = vmatpush1.msra.mxu0 0.0
    %58 = vmatprep.subr.mxu0 0.0
    %59 = vmatpush1.msra.mxu0 0.0
    %60 = vmatprep.subr.mxu0 0.0
    %61 = vmatpush1.msra.mxu0 0.0
    %62 = vmatprep.subr.mxu0 0.0
    %63 = vmatpush1.msra.mxu0 0.0
    %64 = vmatprep.subr.mxu0 0.0
    %65 = vmatpush1.msra.mxu0 0.0
    %66 = vmatprep.subr.mxu0 0.0
    %67 = vmatpush1.msra.mxu0 0.0
    %68 = vmatprep.subr.mxu0 0.0
    %69 = vmatpush1.msra.mxu0 0.0
    %70 = vmatprep.subr.mxu0 0.0
    %71 = vmatpush1.msra.mxu0 0.0
    %72 = vmatprep.subr.mxu0 0.0
    %73 = vmatpush1.msra.mxu0 0.0
    %74 = vmatprep.subr.mxu0 0.0
    %75 = vmatpush1.msra.mxu0 0.0
    %76 = vmatprep.subr.mxu0 0.0
    %77 = vmatpush1.msra.mxu0 0.0
    %78 = vmatprep.subr.mxu0 0.0
    %79 = vmatpush1.msra.mxu0 0.0
    %80 = vmatprep.subr.mxu0 0.0
    %81 = vmatpush1.msra.mxu0 0.0
    %82 = vmatprep.subr.mxu0 0.0
    %83 = vmatpush1.msra.mxu0 0.0
    %84 = vmatprep.subr.mxu0 0.0
    %85 = vmatpush1.msra.mxu0 0.0
    %86 = vmatprep.subr.mxu0 0.0
    %87 = vmatpush1.msra.mxu0 0.0
    %88 = vmatprep.subr.mxu0 0.0
    %89 = vmatpush1.msra.mxu0 0.0
    %90 = vmatprep.subr.mxu0 0.0
    %91 = vmatpush1.msra.mxu0 0.0
    %92 = vmatprep.subr.mxu0 0.0
    %93 = vmatpush1.msra.mxu0 0.0
    %94 = vmatprep.subr.mxu0 0.0
    %95 = vmatpush1.msra.mxu0 0.0
    %96 = vmatprep.subr.mxu0 0.0
    %97 = vmatpush1.msra.mxu0 0.0
    %98 = vmatprep.subr.mxu0 0.0
    %99 = vmatpush1.msra.mxu0 0.0
    %100 = vmatprep.subr.mxu0 0.0
    %101 = vmatpush1.msra.mxu0 0.0
    %102 = vmatprep.subr.mxu0 0.0
    %103 = vmatpush1.msra.mxu0 0.0
    %104 = vmatprep.subr.mxu0 0.0
    %105 = vmatpush1.msra.mxu0 0.0
    %106 = vmatprep.subr.mxu0 0.0
    %107 = vmatpush1.msra.mxu0 0.0
    %108 = vmatprep.subr.mxu0 0.0
    %109 = vmatpush1.msra.mxu0 0.0
    %110 = vmatprep.subr.mxu0 0.0
    %111 = vmatpush1.msra.mxu0 0.0
    %112 = vmatprep.subr.mxu0 0.0
    %113 = vmatpush1.msra.mxu0 0.0
    %114 = vmatprep.subr.mxu0 0.0
    %115 = vmatpush1.msra.mxu0 0.0
    %116 = vmatprep.subr.mxu0 0.0
    %117 = vmatpush1.msra.mxu0 0.0
    %118 = vmatprep.mubr.f32.mxu0 0.0
    %v119 = vand.u32 %v51, 4294901760
    %v120 = vsub.f32 %v51, %v119
    %v121 = vand.u32 %v120, 4294901760
    %v122 = vsub.f32 %v120, %v121
    %v123 = vand.u32 %v122, 4294901760
    %124 = vmatmul.mubr.f32.gmra.mrb[0].mxu0 %v123
    %v125 = vpop.f32.mrb[0].mxu0
    %v126 = vadd.f32 0.0, %v125
    %v127 = vpop.f32.mrb[0].mxu0
    %128 = vdwg.mxu0
    %129 = vmatprep.subr.mxu0 0.0
    %v130 = vand.u32 %v46, 4294901760
    %v131 = vsub.f32 %v46, %v130
    %v132 = vand.u32 %v131, 4294901760
    %v133 = vsub.f32 %v131, %v132
    %v134 = vand.u32 %v133, 4294901760
    %135 = vmatpush1.msra.mxu0 %v134
    %136 = vmatprep.subr.mxu0 0.0
    %137 = vmatpush1.msra.mxu0 0.0
    %138 = vmatprep.subr.mxu0 0.0
    %139 = vmatpush1.msra.mxu0 0.0
    %140 = vmatprep.subr.mxu0 0.0
    %141 = vmatpush1.msra.mxu0 0.0
    %142 = vmatprep.subr.mxu0 0.0
    %143 = vmatpush1.msra.mxu0 0.0
    %144 = vmatprep.subr.mxu0 0.0
    %145 = vmatpush1.msra.mxu0 0.0
    %146 = vmatprep.subr.mxu0 0.0
    %147 = vmatpush1.msra.mxu0 0.0
    %148 = vmatprep.subr.mxu0 0.0
    %149 = vmatpush1.msra.mxu0 0.0
    %150 = vmatprep.subr.mxu0 0.0
    %151 = vmatpush1.msra.mxu0 0.0
    %152 = vmatprep.subr.mxu0 0.0
    %153 = vmatpush1.msra.mxu0 0.0
    %154 = vmatprep.subr.mxu0 0.0
    %155 = vmatpush1.msra.mxu0 0.0
    %156 = vmatprep.subr.mxu0 0.0
    %157 = vmatpush1.msra.mxu0 0.0
    %158 = vmatprep.subr.mxu0 0.0
    %159 = vmatpush1.msra.mxu0 0.0
    %160 = vmatprep.subr.mxu0 0.0
    %161 = vmatpush1.msra.mxu0 0.0
    %162 = vmatprep.subr.mxu0 0.0
    %163 = vmatpush1.msra.mxu0 0.0
    %164 = vmatprep.subr.mxu0 0.0
    %165 = vmatpush1.msra.mxu0 0.0
    %166 = vmatprep.subr.mxu0 0.0
    %167 = vmatpush1.msra.mxu0 0.0
    %168 = vmatprep.subr.mxu0 0.0
    %169 = vmatpush1.msra.mxu0 0.0
    %170 = vmatprep.subr.mxu0 0.0
    %171 = vmatpush1.msra.mxu0 0.0
    %172 = vmatprep.subr.mxu0 0.0
    %173 = vmatpush1.msra.mxu0 0.0
    %174 = vmatprep.subr.mxu0 0.0
    %175 = vmatpush1.msra.mxu0 0.0
    %176 = vmatprep.subr.mxu0 0.0
    %177 = vmatpush1.msra.mxu0 0.0
    %178 = vmatprep.subr.mxu0 0.0
    %179 = vmatpush1.msra.mxu0 0.0
    %180 = vmatprep.subr.mxu0 0.0
    %181 = vmatpush1.msra.mxu0 0.0
    %182 = vmatprep.subr.mxu0 0.0
    %183 = vmatpush1.msra.mxu0 0.0
    %184 = vmatprep.subr.mxu0 0.0
    %185 = vmatpush1.msra.mxu0 0.0
    %186 = vmatprep.subr.mxu0 0.0
    %187 = vmatpush1.msra.mxu0 0.0
    %188 = vmatprep.subr.mxu0 0.0
    %189 = vmatpush1.msra.mxu0 0.0
    %190 = vmatprep.subr.mxu0 0.0
    %191 = vmatpush1.msra.mxu0 0.0
    %192 = vmatprep.subr.mxu0 0.0
    %193 = vmatpush1.msra.mxu0 0.0
    %194 = vmatprep.subr.mxu0 0.0
    %195 = vmatpush1.msra.mxu0 0.0
    %196 = vmatprep.subr.mxu0 0.0
    %197 = vmatpush1.msra.mxu0 0.0
    %198 = vmatprep.mubr.f32.mxu0 0.0
    %v199 = vand.u32 %v51, 4294901760
    %200 = vmatmul.mubr.f32.gmra.mrb[0].mxu0 %v199
    %v201 = vpop.f32.mrb[0].mxu0
    %v202 = vadd.f32 %v126, %v201
    %v203 = vpop.f32.mrb[0].mxu0
    %204 = vdwg.mxu0
    %205 = vmatprep.subr.mxu0 0.0
    %v206 = vand.u32 %v46, 4294901760
    %v207 = vsub.f32 %v46, %v206
    %208 = vmatpush1.msra.mxu0 %v207
    %209 = vmatprep.subr.mxu0 0.0
    %210 = vmatpush1.msra.mxu0 0.0
    %211 = vmatprep.subr.mxu0 0.0
    %212 = vmatpush1.msra.mxu0 0.0
    %213 = vmatprep.subr.mxu0 0.0
    %214 = vmatpush1.msra.mxu0 0.0
    %215 = vmatprep.subr.mxu0 0.0
    %216 = vmatpush1.msra.mxu0 0.0
    %217 = vmatprep.subr.mxu0 0.0
    %218 = vmatpush1.msra.mxu0 0.0
    %219 = vmatprep.subr.mxu0 0.0
    %220 = vmatpush1.msra.mxu0 0.0
    %221 = vmatprep.subr.mxu0 0.0
    %222 = vmatpush1.msra.mxu0 0.0
    %223 = vmatprep.subr.mxu0 0.0
    %224 = vmatpush1.msra.mxu0 0.0
    %225 = vmatprep.subr.mxu0 0.0
    %226 = vmatpush1.msra.mxu0 0.0
    %227 = vmatprep.subr.mxu0 0.0
    %228 = vmatpush1.msra.mxu0 0.0
    %229 = vmatprep.subr.mxu0 0.0
    %230 = vmatpush1.msra.mxu0 0.0
    %231 = vmatprep.subr.mxu0 0.0
    %232 = vmatpush1.msra.mxu0 0.0
    %233 = vmatprep.subr.mxu0 0.0
    %234 = vmatpush1.msra.mxu0 0.0
    %235 = vmatprep.subr.mxu0 0.0
    %236 = vmatpush1.msra.mxu0 0.0
    %237 = vmatprep.subr.mxu0 0.0
    %238 = vmatpush1.msra.mxu0 0.0
    %239 = vmatprep.subr.mxu0 0.0
    %240 = vmatpush1.msra.mxu0 0.0
    %241 = vmatprep.subr.mxu0 0.0
    %242 = vmatpush1.msra.mxu0 0.0
    %243 = vmatprep.subr.mxu0 0.0
    %244 = vmatpush1.msra.mxu0 0.0
    %245 = vmatprep.subr.mxu0 0.0
    %246 = vmatpush1.msra.mxu0 0.0
    %247 = vmatprep.subr.mxu0 0.0
    %248 = vmatpush1.msra.mxu0 0.0
    %249 = vmatprep.subr.mxu0 0.0
    %250 = vmatpush1.msra.mxu0 0.0
    %251 = vmatprep.subr.mxu0 0.0
    %252 = vmatpush1.msra.mxu0 0.0
    %253 = vmatprep.subr.mxu0 0.0
    %254 = vmatpush1.msra.mxu0 0.0
    %255 = vmatprep.subr.mxu0 0.0
    %256 = vmatpush1.msra.mxu0 0.0
    %257 = vmatprep.subr.mxu0 0.0
    %258 = vmatpush1.msra.mxu0 0.0
    %259 = vmatprep.subr.mxu0 0.0
    %260 = vmatpush1.msra.mxu0 0.0
    %261 = vmatprep.subr.mxu0 0.0
    %262 = vmatpush1.msra.mxu0 0.0
    %263 = vmatprep.subr.mxu0 0.0
    %264 = vmatpush1.msra.mxu0 0.0
    %265 = vmatprep.subr.mxu0 0.0
    %266 = vmatpush1.msra.mxu0 0.0
    %267 = vmatprep.subr.mxu0 0.0
    %268 = vmatpush1.msra.mxu0 0.0
    %269 = vmatprep.subr.mxu0 0.0
    %270 = vmatpush1.msra.mxu0 0.0
    %271 = vmatprep.mubr.f32.mxu0 0.0
    %v272 = vand.u32 %v51, 4294901760
    %v273 = vsub.f32 %v51, %v272
    %274 = vmatmul.mubr.f32.gmra.mrb[0].mxu0 %v273
    %v275 = vpop.f32.mrb[0].mxu0
    %v276 = vadd.f32 %v202, %v275
    %v277 = vpop.f32.mrb[0].mxu0
    %278 = vdwg.mxu0
    %279 = vmatprep.subr.mxu0 0.0
    %v280 = vand.u32 %v46, 4294901760
    %281 = vmatpush1.msra.mxu0 %v280
    %282 = vmatprep.subr.mxu0 0.0
    %283 = vmatpush1.msra.mxu0 0.0
    %284 = vmatprep.subr.mxu0 0.0
    %285 = vmatpush1.msra.mxu0 0.0
    %286 = vmatprep.subr.mxu0 0.0
    %287 = vmatpush1.msra.mxu0 0.0
    %288 = vmatprep.subr.mxu0 0.0
    %289 = vmatpush1.msra.mxu0 0.0
    %290 = vmatprep.subr.mxu0 0.0
    %291 = vmatpush1.msra.mxu0 0.0
    %292 = vmatprep.subr.mxu0 0.0
    %293 = vmatpush1.msra.mxu0 0.0
    %294 = vmatprep.subr.mxu0 0.0
    %295 = vmatpush1.msra.mxu0 0.0
    %296 = vmatprep.subr.mxu0 0.0
    %297 = vmatpush1.msra.mxu0 0.0
    %298 = vmatprep.subr.mxu0 0.0
    %299 = vmatpush1.msra.mxu0 0.0
    %300 = vmatprep.subr.mxu0 0.0
    %301 = vmatpush1.msra.mxu0 0.0
    %302 = vmatprep.subr.mxu0 0.0
    %303 = vmatpush1.msra.mxu0 0.0
    %304 = vmatprep.subr.mxu0 0.0
    %305 = vmatpush1.msra.mxu0 0.0
    %306 = vmatprep.subr.mxu0 0.0
    %307 = vmatpush1.msra.mxu0 0.0
    %308 = vmatprep.subr.mxu0 0.0
    %309 = vmatpush1.msra.mxu0 0.0
    %310 = vmatprep.subr.mxu0 0.0
    %311 = vmatpush1.msra.mxu0 0.0
    %312 = vmatprep.subr.mxu0 0.0
    %313 = vmatpush1.msra.mxu0 0.0
    %314 = vmatprep.subr.mxu0 0.0
    %315 = vmatpush1.msra.mxu0 0.0
    %316 = vmatprep.subr.mxu0 0.0
    %317 = vmatpush1.msra.mxu0 0.0
    %318 = vmatprep.subr.mxu0 0.0
    %319 = vmatpush1.msra.mxu0 0.0
    %320 = vmatprep.subr.mxu0 0.0
    %321 = vmatpush1.msra.mxu0 0.0
    %322 = vmatprep.subr.mxu0 0.0
    %323 = vmatpush1.msra.mxu0 0.0
    %324 = vmatprep.subr.mxu0 0.0
    %325 = vmatpush1.msra.mxu0 0.0
    %326 = vmatprep.subr.mxu0 0.0
    %327 = vmatpush1.msra.mxu0 0.0
    %328 = vmatprep.subr.mxu0 0.0
    %329 = vmatpush1.msra.mxu0 0.0
    %330 = vmatprep.subr.mxu0 0.0
    %331 = vmatpush1.msra.mxu0 0.0
    %332 = vmatprep.subr.mxu0 0.0
    %333 = vmatpush1.msra.mxu0 0.0
    %334 = vmatprep.subr.mxu0 0.0
    %335 = vmatpush1.msra.mxu0 0.0
    %336 = vmatprep.subr.mxu0 0.0
    %337 = vmatpush1.msra.mxu0 0.0
    %338 = vmatprep.subr.mxu0 0.0
    %339 = vmatpush1.msra.mxu0 0.0
    %340 = vmatprep.subr.mxu0 0.0
    %341 = vmatpush1.msra.mxu0 0.0
    %342 = vmatprep.subr.mxu0 0.0
    %343 = vmatpush1.msra.mxu0 0.0
    %344 = vmatprep.mubr.f32.mxu0 0.0
    %v345 = vand.u32 %v51, 4294901760
    %v346 = vsub.f32 %v51, %v345
    %v347 = vand.u32 %v346, 4294901760
    %348 = vmatmul.mubr.f32.gmra.mrb[0].mxu0 %v347
    %v349 = vpop.f32.mrb[0].mxu0
    %v350 = vadd.f32 %v276, %v349
    %v351 = vpop.f32.mrb[0].mxu0
    %352 = vdwg.mxu0
    %353 = vmatprep.subr.mxu0 0.0
    %v354 = vand.u32 %v46, 4294901760
    %v355 = vsub.f32 %v46, %v354
    %v356 = vand.u32 %v355, 4294901760
    %357 = vmatpush1.msra.mxu0 %v356
    %358 = vmatprep.subr.mxu0 0.0
    %359 = vmatpush1.msra.mxu0 0.0
    %360 = vmatprep.subr.mxu0 0.0
    %361 = vmatpush1.msra.mxu0 0.0
    %362 = vmatprep.subr.mxu0 0.0
    %363 = vmatpush1.msra.mxu0 0.0
    %364 = vmatprep.subr.mxu0 0.0
    %365 = vmatpush1.msra.mxu0 0.0
    %366 = vmatprep.subr.mxu0 0.0
    %367 = vmatpush1.msra.mxu0 0.0
    %368 = vmatprep.subr.mxu0 0.0
    %369 = vmatpush1.msra.mxu0 0.0
    %370 = vmatprep.subr.mxu0 0.0
    %371 = vmatpush1.msra.mxu0 0.0
    %372 = vmatprep.subr.mxu0 0.0
    %373 = vmatpush1.msra.mxu0 0.0
    %374 = vmatprep.subr.mxu0 0.0
    %375 = vmatpush1.msra.mxu0 0.0
    %376 = vmatprep.subr.mxu0 0.0
    %377 = vmatpush1.msra.mxu0 0.0
    %378 = vmatprep.subr.mxu0 0.0
    %379 = vmatpush1.msra.mxu0 0.0
    %380 = vmatprep.subr.mxu0 0.0
    %381 = vmatpush1.msra.mxu0 0.0
    %382 = vmatprep.subr.mxu0 0.0
    %383 = vmatpush1.msra.mxu0 0.0
    %384 = vmatprep.subr.mxu0 0.0
    %385 = vmatpush1.msra.mxu0 0.0
    %386 = vmatprep.subr.mxu0 0.0
    %387 = vmatpush1.msra.mxu0 0.0
    %388 = vmatprep.subr.mxu0 0.0
    %389 = vmatpush1.msra.mxu0 0.0
    %390 = vmatprep.subr.mxu0 0.0
    %391 = vmatpush1.msra.mxu0 0.0
    %392 = vmatprep.subr.mxu0 0.0
    %393 = vmatpush1.msra.mxu0 0.0
    %394 = vmatprep.subr.mxu0 0.0
    %395 = vmatpush1.msra.mxu0 0.0
    %396 = vmatprep.subr.mxu0 0.0
    %397 = vmatpush1.msra.mxu0 0.0
    %398 = vmatprep.subr.mxu0 0.0
    %399 = vmatpush1.msra.mxu0 0.0
    %400 = vmatprep.subr.mxu0 0.0
    %401 = vmatpush1.msra.mxu0 0.0
    %402 = vmatprep.subr.mxu0 0.0
    %403 = vmatpush1.msra.mxu0 0.0
    %404 = vmatprep.subr.mxu0 0.0
    %405 = vmatpush1.msra.mxu0 0.0
    %406 = vmatprep.subr.mxu0 0.0
    %407 = vmatpush1.msra.mxu0 0.0
    %408 = vmatprep.subr.mxu0 0.0
    %409 = vmatpush1.msra.mxu0 0.0
    %410 = vmatprep.subr.mxu0 0.0
    %411 = vmatpush1.msra.mxu0 0.0
    %412 = vmatprep.subr.mxu0 0.0
    %413 = vmatpush1.msra.mxu0 0.0
    %414 = vmatprep.subr.mxu0 0.0
    %415 = vmatpush1.msra.mxu0 0.0
    %416 = vmatprep.subr.mxu0 0.0
    %417 = vmatpush1.msra.mxu0 0.0
    %418 = vmatprep.subr.mxu0 0.0
    %419 = vmatpush1.msra.mxu0 0.0
    %420 = vmatprep.mubr.f32.mxu0 0.0
    %v421 = vand.u32 %v51, 4294901760
    %422 = vmatmul.mubr.f32.gmra.mrb[0].mxu0 %v421
    %v423 = vpop.f32.mrb[0].mxu0
    %v424 = vadd.f32 %v350, %v423
    %v425 = vpop.f32.mrb[0].mxu0
    %426 = vdwg.mxu0
    %427 = vmatprep.subr.mxu0 0.0
    %v428 = vand.u32 %v46, 4294901760
    %429 = vmatpush1.msra.mxu0 %v428
    %430 = vmatprep.subr.mxu0 0.0
    %431 = vmatpush1.msra.mxu0 0.0
    %432 = vmatprep.subr.mxu0 0.0
    %433 = vmatpush1.msra.mxu0 0.0
    %434 = vmatprep.subr.mxu0 0.0
    %435 = vmatpush1.msra.mxu0 0.0
    %436 = vmatprep.subr.mxu0 0.0
    %437 = vmatpush1.msra.mxu0 0.0
    %438 = vmatprep.subr.mxu0 0.0
    %439 = vmatpush1.msra.mxu0 0.0
    %440 = vmatprep.subr.mxu0 0.0
    %441 = vmatpush1.msra.mxu0 0.0
    %442 = vmatprep.subr.mxu0 0.0
    %443 = vmatpush1.msra.mxu0 0.0
    %444 = vmatprep.subr.mxu0 0.0
    %445 = vmatpush1.msra.mxu0 0.0
    %446 = vmatprep.subr.mxu0 0.0
    %447 = vmatpush1.msra.mxu0 0.0
    %448 = vmatprep.subr.mxu0 0.0
    %449 = vmatpush1.msra.mxu0 0.0
    %450 = vmatprep.subr.mxu0 0.0
    %451 = vmatpush1.msra.mxu0 0.0
    %452 = vmatprep.subr.mxu0 0.0
    %453 = vmatpush1.msra.mxu0 0.0
    %454 = vmatprep.subr.mxu0 0.0
    %455 = vmatpush1.msra.mxu0 0.0
    %456 = vmatprep.subr.mxu0 0.0
    %457 = vmatpush1.msra.mxu0 0.0
    %458 = vmatprep.subr.mxu0 0.0
    %459 = vmatpush1.msra.mxu0 0.0
    %460 = vmatprep.subr.mxu0 0.0
    %461 = vmatpush1.msra.mxu0 0.0
    %462 = vmatprep.subr.mxu0 0.0
    %463 = vmatpush1.msra.mxu0 0.0
    %464 = vmatprep.subr.mxu0 0.0
    %465 = vmatpush1.msra.mxu0 0.0
    %466 = vmatprep.subr.mxu0 0.0
    %467 = vmatpush1.msra.mxu0 0.0
    %468 = vmatprep.subr.mxu0 0.0
    %469 = vmatpush1.msra.mxu0 0.0
    %470 = vmatprep.subr.mxu0 0.0
    %471 = vmatpush1.msra.mxu0 0.0
    %472 = vmatprep.subr.mxu0 0.0
    %473 = vmatpush1.msra.mxu0 0.0
    %474 = vmatprep.subr.mxu0 0.0
    %475 = vmatpush1.msra.mxu0 0.0
    %476 = vmatprep.subr.mxu0 0.0
    %477 = vmatpush1.msra.mxu0 0.0
    %478 = vmatprep.subr.mxu0 0.0
    %479 = vmatpush1.msra.mxu0 0.0
    %480 = vmatprep.subr.mxu0 0.0
    %481 = vmatpush1.msra.mxu0 0.0
    %482 = vmatprep.subr.mxu0 0.0
    %483 = vmatpush1.msra.mxu0 0.0
    %484 = vmatprep.subr.mxu0 0.0
    %485 = vmatpush1.msra.mxu0 0.0
    %486 = vmatprep.subr.mxu0 0.0
    %487 = vmatpush1.msra.mxu0 0.0
    %488 = vmatprep.subr.mxu0 0.0
    %489 = vmatpush1.msra.mxu0 0.0
    %490 = vmatprep.subr.mxu0 0.0
    %491 = vmatpush1.msra.mxu0 0.0
    %492 = vmatprep.mubr.f32.mxu0 0.0
    %v493 = vand.u32 %v51, 4294901760
    %494 = vmatmul.mubr.f32.gmra.mrb[0].mxu0 %v493
    %v495 = vpop.f32.mrb[0].mxu0
    %v496 = vadd.f32 %v424, %v495
    %v497 = vpop.f32.mrb[0].mxu0
    %498 = vdwg.mxu0
    %v499 = vadd.f32 %v48, %v496
    %vm500 = vcmask 122880
    %501 = vst.msk [vmem:[#allocation7] sm:$0x1] %vm500, %v499
    %v502 = vld [vmem:[#allocation8] sm:$0x1]
    %v503 = vmul.f32 %v46, %v46
    %504 = vmatprep.subr.mxu0 0.0
    %v505 = vand.u32 %v503, 4294901760
    %506 = vmatpush1.msra.mxu0 %v505
    %507 = vmatprep.subr.mxu0 0.0
    %508 = vmatpush1.msra.mxu0 0.0
    %509 = vmatprep.subr.mxu0 0.0
    %510 = vmatpush1.msra.mxu0 0.0
    %511 = vmatprep.subr.mxu0 0.0
    %512 = vmatpush1.msra.mxu0 0.0
    %513 = vmatprep.subr.mxu0 0.0
    %514 = vmatpush1.msra.mxu0 0.0
    %515 = vmatprep.subr.mxu0 0.0
    %516 = vmatpush1.msra.mxu0 0.0
    %517 = vmatprep.subr.mxu0 0.0
    %518 = vmatpush1.msra.mxu0 0.0
    %519 = vmatprep.subr.mxu0 0.0
    %520 = vmatpush1.msra.mxu0 0.0
    %521 = vmatprep.subr.mxu0 0.0
    %522 = vmatpush1.msra.mxu0 0.0
    %523 = vmatprep.subr.mxu0 0.0
    %524 = vmatpush1.msra.mxu0 0.0
    %525 = vmatprep.subr.mxu0 0.0
    %526 = vmatpush1.msra.mxu0 0.0
    %527 = vmatprep.subr.mxu0 0.0
    %528 = vmatpush1.msra.mxu0 0.0
    %529 = vmatprep.subr.mxu0 0.0
    %530 = vmatpush1.msra.mxu0 0.0
    %531 = vmatprep.subr.mxu0 0.0
    %532 = vmatpush1.msra.mxu0 0.0
    %533 = vmatprep.subr.mxu0 0.0
    %534 = vmatpush1.msra.mxu0 0.0
    %535 = vmatprep.subr.mxu0 0.0
    %536 = vmatpush1.msra.mxu0 0.0
    %537 = vmatprep.subr.mxu0 0.0
    %538 = vmatpush1.msra.mxu0 0.0
    %539 = vmatprep.subr.mxu0 0.0
    %540 = vmatpush1.msra.mxu0 0.0
    %541 = vmatprep.subr.mxu0 0.0
    %542 = vmatpush1.msra.mxu0 0.0
    %543 = vmatprep.subr.mxu0 0.0
    %544 = vmatpush1.msra.mxu0 0.0
    %545 = vmatprep.subr.mxu0 0.0
    %546 = vmatpush1.msra.mxu0 0.0
    %547 = vmatprep.subr.mxu0 0.0
    %548 = vmatpush1.msra.mxu0 0.0
    %549 = vmatprep.subr.mxu0 0.0
    %550 = vmatpush1.msra.mxu0 0.0
    %551 = vmatprep.subr.mxu0 0.0
    %552 = vmatpush1.msra.mxu0 0.0
    %553 = vmatprep.subr.mxu0 0.0
    %554 = vmatpush1.msra.mxu0 0.0
    %555 = vmatprep.subr.mxu0 0.0
    %556 = vmatpush1.msra.mxu0 0.0
    %557 = vmatprep.subr.mxu0 0.0
    %558 = vmatpush1.msra.mxu0 0.0
    %559 = vmatprep.subr.mxu0 0.0
    %560 = vmatpush1.msra.mxu0 0.0
    %561 = vmatprep.subr.mxu0 0.0
    %562 = vmatpush1.msra.mxu0 0.0
    %563 = vmatprep.subr.mxu0 0.0
    %564 = vmatpush1.msra.mxu0 0.0
    %565 = vmatprep.subr.mxu0 0.0
    %566 = vmatpush1.msra.mxu0 0.0
    %567 = vmatprep.subr.mxu0 0.0
    %568 = vmatpush1.msra.mxu0 0.0
    %569 = vmatprep.mubr.f32.mxu0 0.0
    %v570 = vand.u32 %v51, 4294901760
    %v571 = vsub.f32 %v51, %v570
    %v572 = vand.u32 %v571, 4294901760
    %v573 = vsub.f32 %v571, %v572
    %v574 = vand.u32 %v573, 4294901760
    %575 = vmatmul.mubr.f32.gmra.mrb[0].mxu0 %v574
    %v576 = vpop.f32.mrb[0].mxu0
    %v577 = vadd.f32 0.0, %v576
    %v578 = vpop.f32.mrb[0].mxu0
    %579 = vdwg.mxu0
    %580 = vmatprep.subr.mxu0 0.0
    %v581 = vand.u32 %v503, 4294901760
    %v582 = vsub.f32 %v503, %v581
    %v583 = vand.u32 %v582, 4294901760
    %v584 = vsub.f32 %v582, %v583
    %v585 = vand.u32 %v584, 4294901760
    %586 = vmatpush1.msra.mxu0 %v585
    %587 = vmatprep.subr.mxu0 0.0
    %588 = vmatpush1.msra.mxu0 0.0
    %589 = vmatprep.subr.mxu0 0.0
    %590 = vmatpush1.msra.mxu0 0.0
    %591 = vmatprep.subr.mxu0 0.0
    %592 = vmatpush1.msra.mxu0 0.0
    %593 = vmatprep.subr.mxu0 0.0
    %594 = vmatpush1.msra.mxu0 0.0
    %595 = vmatprep.subr.mxu0 0.0
    %596 = vmatpush1.msra.mxu0 0.0
    %597 = vmatprep.subr.mxu0 0.0
    %598 = vmatpush1.msra.mxu0 0.0
    %599 = vmatprep.subr.mxu0 0.0
    %600 = vmatpush1.msra.mxu0 0.0
    %601 = vmatprep.subr.mxu0 0.0
    %602 = vmatpush1.msra.mxu0 0.0
    %603 = vmatprep.subr.mxu0 0.0
    %604 = vmatpush1.msra.mxu0 0.0
    %605 = vmatprep.subr.mxu0 0.0
    %606 = vmatpush1.msra.mxu0 0.0
    %607 = vmatprep.subr.mxu0 0.0
    %608 = vmatpush1.msra.mxu0 0.0
    %609 = vmatprep.subr.mxu0 0.0
    %610 = vmatpush1.msra.mxu0 0.0
    %611 = vmatprep.subr.mxu0 0.0
    %612 = vmatpush1.msra.mxu0 0.0
    %613 = vmatprep.subr.mxu0 0.0
    %614 = vmatpush1.msra.mxu0 0.0
    %615 = vmatprep.subr.mxu0 0.0
    %616 = vmatpush1.msra.mxu0 0.0
    %617 = vmatprep.subr.mxu0 0.0
    %618 = vmatpush1.msra.mxu0 0.0
    %619 = vmatprep.subr.mxu0 0.0
    %620 = vmatpush1.msra.mxu0 0.0
    %621 = vmatprep.subr.mxu0 0.0
    %622 = vmatpush1.msra.mxu0 0.0
    %623 = vmatprep.subr.mxu0 0.0
    %624 = vmatpush1.msra.mxu0 0.0
    %625 = vmatprep.subr.mxu0 0.0
    %626 = vmatpush1.msra.mxu0 0.0
    %627 = vmatprep.subr.mxu0 0.0
    %628 = vmatpush1.msra.mxu0 0.0
    %629 = vmatprep.subr.mxu0 0.0
    %630 = vmatpush1.msra.mxu0 0.0
    %631 = vmatprep.subr.mxu0 0.0
    %632 = vmatpush1.msra.mxu0 0.0
    %633 = vmatprep.subr.mxu0 0.0
    %634 = vmatpush1.msra.mxu0 0.0
    %635 = vmatprep.subr.mxu0 0.0
    %636 = vmatpush1.msra.mxu0 0.0
    %637 = vmatprep.subr.mxu0 0.0
    %638 = vmatpush1.msra.mxu0 0.0
    %639 = vmatprep.subr.mxu0 0.0
    %640 = vmatpush1.msra.mxu0 0.0
    %641 = vmatprep.subr.mxu0 0.0
    %642 = vmatpush1.msra.mxu0 0.0
    %643 = vmatprep.subr.mxu0 0.0
    %644 = vmatpush1.msra.mxu0 0.0
    %645 = vmatprep.subr.mxu0 0.0
    %646 = vmatpush1.msra.mxu0 0.0
    %647 = vmatprep.subr.mxu0 0.0
    %648 = vmatpush1.msra.mxu0 0.0
    %649 = vmatprep.mubr.f32.mxu0 0.0
    %v650 = vand.u32 %v51, 4294901760
    %651 = vmatmul.mubr.f32.gmra.mrb[0].mxu0 %v650
    %v652 = vpop.f32.mrb[0].mxu0
    %v653 = vadd.f32 %v577, %v652
    %v654 = vpop.f32.mrb[0].mxu0
    %655 = vdwg.mxu0
    %656 = vmatprep.subr.mxu0 0.0
    %v657 = vand.u32 %v503, 4294901760
    %v658 = vsub.f32 %v503, %v657
    %659 = vmatpush1.msra.mxu0 %v658
    %660 = vmatprep.subr.mxu0 0.0
    %661 = vmatpush1.msra.mxu0 0.0
    %662 = vmatprep.subr.mxu0 0.0
    %663 = vmatpush1.msra.mxu0 0.0
    %664 = vmatprep.subr.mxu0 0.0
    %665 = vmatpush1.msra.mxu0 0.0
    %666 = vmatprep.subr.mxu0 0.0
    %667 = vmatpush1.msra.mxu0 0.0
    %668 = vmatprep.subr.mxu0 0.0
    %669 = vmatpush1.msra.mxu0 0.0
    %670 = vmatprep.subr.mxu0 0.0
    %671 = vmatpush1.msra.mxu0 0.0
    %672 = vmatprep.subr.mxu0 0.0
    %673 = vmatpush1.msra.mxu0 0.0
    %674 = vmatprep.subr.mxu0 0.0
    %675 = vmatpush1.msra.mxu0 0.0
    %676 = vmatprep.subr.mxu0 0.0
    %677 = vmatpush1.msra.mxu0 0.0
    %678 = vmatprep.subr.mxu0 0.0
    %679 = vmatpush1.msra.mxu0 0.0
    %680 = vmatprep.subr.mxu0 0.0
    %681 = vmatpush1.msra.mxu0 0.0
    %682 = vmatprep.subr.mxu0 0.0
    %683 = vmatpush1.msra.mxu0 0.0
    %684 = vmatprep.subr.mxu0 0.0
    %685 = vmatpush1.msra.mxu0 0.0
    %686 = vmatprep.subr.mxu0 0.0
    %687 = vmatpush1.msra.mxu0 0.0
    %688 = vmatprep.subr.mxu0 0.0
    %689 = vmatpush1.msra.mxu0 0.0
    %690 = vmatprep.subr.mxu0 0.0
    %691 = vmatpush1.msra.mxu0 0.0
    %692 = vmatprep.subr.mxu0 0.0
    %693 = vmatpush1.msra.mxu0 0.0
    %694 = vmatprep.subr.mxu0 0.0
    %695 = vmatpush1.msra.mxu0 0.0
    %696 = vmatprep.subr.mxu0 0.0
    %697 = vmatpush1.msra.mxu0 0.0
    %698 = vmatprep.subr.mxu0 0.0
    %699 = vmatpush1.msra.mxu0 0.0
    %700 = vmatprep.subr.mxu0 0.0
    %701 = vmatpush1.msra.mxu0 0.0
    %702 = vmatprep.subr.mxu0 0.0
    %703 = vmatpush1.msra.mxu0 0.0
    %704 = vmatprep.subr.mxu0 0.0
    %705 = vmatpush1.msra.mxu0 0.0
    %706 = vmatprep.subr.mxu0 0.0
    %707 = vmatpush1.msra.mxu0 0.0
    %708 = vmatprep.subr.mxu0 0.0
    %709 = vmatpush1.msra.mxu0 0.0
    %710 = vmatprep.subr.mxu0 0.0
    %711 = vmatpush1.msra.mxu0 0.0
    %712 = vmatprep.subr.mxu0 0.0
    %713 = vmatpush1.msra.mxu0 0.0
    %714 = vmatprep.subr.mxu0 0.0
    %715 = vmatpush1.msra.mxu0 0.0
    %716 = vmatprep.subr.mxu0 0.0
    %717 = vmatpush1.msra.mxu0 0.0
    %718 = vmatprep.subr.mxu0 0.0
    %719 = vmatpush1.msra.mxu0 0.0
    %720 = vmatprep.subr.mxu0 0.0
    %721 = vmatpush1.msra.mxu0 0.0
    %722 = vmatprep.mubr.f32.mxu0 0.0
    %v723 = vand.u32 %v51, 4294901760
    %v724 = vsub.f32 %v51, %v723
    %725 = vmatmul.mubr.f32.gmra.mrb[0].mxu0 %v724
    %v726 = vpop.f32.mrb[0].mxu0
    %v727 = vadd.f32 %v653, %v726
    %v728 = vpop.f32.mrb[0].mxu0
    %729 = vdwg.mxu0
    %730 = vmatprep.subr.mxu0 0.0
    %v731 = vand.u32 %v503, 4294901760
    %732 = vmatpush1.msra.mxu0 %v731
    %733 = vmatprep.subr.mxu0 0.0
    %734 = vmatpush1.msra.mxu0 0.0
    %735 = vmatprep.subr.mxu0 0.0
    %736 = vmatpush1.msra.mxu0 0.0
    %737 = vmatprep.subr.mxu0 0.0
    %738 = vmatpush1.msra.mxu0 0.0
    %739 = vmatprep.subr.mxu0 0.0
    %740 = vmatpush1.msra.mxu0 0.0
    %741 = vmatprep.subr.mxu0 0.0
    %742 = vmatpush1.msra.mxu0 0.0
    %743 = vmatprep.subr.mxu0 0.0
    %744 = vmatpush1.msra.mxu0 0.0
    %745 = vmatprep.subr.mxu0 0.0
    %746 = vmatpush1.msra.mxu0 0.0
    %747 = vmatprep.subr.mxu0 0.0
    %748 = vmatpush1.msra.mxu0 0.0
    %749 = vmatprep.subr.mxu0 0.0
    %750 = vmatpush1.msra.mxu0 0.0
    %751 = vmatprep.subr.mxu0 0.0
    %752 = vmatpush1.msra.mxu0 0.0
    %753 = vmatprep.subr.mxu0 0.0
    %754 = vmatpush1.msra.mxu0 0.0
    %755 = vmatprep.subr.mxu0 0.0
    %756 = vmatpush1.msra.mxu0 0.0
    %757 = vmatprep.subr.mxu0 0.0
    %758 = vmatpush1.msra.mxu0 0.0
    %759 = vmatprep.subr.mxu0 0.0
    %760 = vmatpush1.msra.mxu0 0.0
    %761 = vmatprep.subr.mxu0 0.0
    %762 = vmatpush1.msra.mxu0 0.0
    %763 = vmatprep.subr.mxu0 0.0
    %764 = vmatpush1.msra.mxu0 0.0
    %765 = vmatprep.subr.mxu0 0.0
    %766 = vmatpush1.msra.mxu0 0.0
    %767 = vmatprep.subr.mxu0 0.0
    %768 = vmatpush1.msra.mxu0 0.0
    %769 = vmatprep.subr.mxu0 0.0
    %770 = vmatpush1.msra.mxu0 0.0
    %771 = vmatprep.subr.mxu0 0.0
    %772 = vmatpush1.msra.mxu0 0.0
    %773 = vmatprep.subr.mxu0 0.0
    %774 = vmatpush1.msra.mxu0 0.0
    %775 = vmatprep.subr.mxu0 0.0
    %776 = vmatpush1.msra.mxu0 0.0
    %777 = vmatprep.subr.mxu0 0.0
    %778 = vmatpush1.msra.mxu0 0.0
    %779 = vmatprep.subr.mxu0 0.0
    %780 = vmatpush1.msra.mxu0 0.0
    %781 = vmatprep.subr.mxu0 0.0
    %782 = vmatpush1.msra.mxu0 0.0
    %783 = vmatprep.subr.mxu0 0.0
    %784 = vmatpush1.msra.mxu0 0.0
    %785 = vmatprep.subr.mxu0 0.0
    %786 = vmatpush1.msra.mxu0 0.0
    %787 = vmatprep.subr.mxu0 0.0
    %788 = vmatpush1.msra.mxu0 0.0
    %789 = vmatprep.subr.mxu0 0.0
    %790 = vmatpush1.msra.mxu0 0.0
    %791 = vmatprep.subr.mxu0 0.0
    %792 = vmatpush1.msra.mxu0 0.0
    %793 = vmatprep.subr.mxu0 0.0
    %794 = vmatpush1.msra.mxu0 0.0
    %795 = vmatprep.mubr.f32.mxu0 0.0
    %v796 = vand.u32 %v51, 4294901760
    %v797 = vsub.f32 %v51, %v796
    %v798 = vand.u32 %v797, 4294901760
    %799 = vmatmul.mubr.f32.gmra.mrb[0].mxu0 %v798
    %v800 = vpop.f32.mrb[0].mxu0
    %v801 = vadd.f32 %v727, %v800
    %v802 = vpop.f32.mrb[0].mxu0
    %803 = vdwg.mxu0
    %804 = vmatprep.subr.mxu0 0.0
    %v805 = vand.u32 %v503, 4294901760
    %v806 = vsub.f32 %v503, %v805
    %v807 = vand.u32 %v806, 4294901760
    %808 = vmatpush1.msra.mxu0 %v807
    %809 = vmatprep.subr.mxu0 0.0
    %810 = vmatpush1.msra.mxu0 0.0
    %811 = vmatprep.subr.mxu0 0.0
    %812 = vmatpush1.msra.mxu0 0.0
    %813 = vmatprep.subr.mxu0 0.0
    %814 = vmatpush1.msra.mxu0 0.0
    %815 = vmatprep.subr.mxu0 0.0
    %816 = vmatpush1.msra.mxu0 0.0
    %817 = vmatprep.subr.mxu0 0.0
    %818 = vmatpush1.msra.mxu0 0.0
    %819 = vmatprep.subr.mxu0 0.0
    %820 = vmatpush1.msra.mxu0 0.0
    %821 = vmatprep.subr.mxu0 0.0
    %822 = vmatpush1.msra.mxu0 0.0
    %823 = vmatprep.subr.mxu0 0.0
    %824 = vmatpush1.msra.mxu0 0.0
    %825 = vmatprep.subr.mxu0 0.0
    %826 = vmatpush1.msra.mxu0 0.0
    %827 = vmatprep.subr.mxu0 0.0
    %828 = vmatpush1.msra.mxu0 0.0
    %829 = vmatprep.subr.mxu0 0.0
    %830 = vmatpush1.msra.mxu0 0.0
    %831 = vmatprep.subr.mxu0 0.0
    %832 = vmatpush1.msra.mxu0 0.0
    %833 = vmatprep.subr.mxu0 0.0
    %834 = vmatpush1.msra.mxu0 0.0
    %835 = vmatprep.subr.mxu0 0.0
    %836 = vmatpush1.msra.mxu0 0.0
    %837 = vmatprep.subr.mxu0 0.0
    %838 = vmatpush1.msra.mxu0 0.0
    %839 = vmatprep.subr.mxu0 0.0
    %840 = vmatpush1.msra.mxu0 0.0
    %841 = vmatprep.subr.mxu0 0.0
    %842 = vmatpush1.msra.mxu0 0.0
    %843 = vmatprep.subr.mxu0 0.0
    %844 = vmatpush1.msra.mxu0 0.0
    %845 = vmatprep.subr.mxu0 0.0
    %846 = vmatpush1.msra.mxu0 0.0
    %847 = vmatprep.subr.mxu0 0.0
    %848 = vmatpush1.msra.mxu0 0.0
    %849 = vmatprep.subr.mxu0 0.0
    %850 = vmatpush1.msra.mxu0 0.0
    %851 = vmatprep.subr.mxu0 0.0
    %852 = vmatpush1.msra.mxu0 0.0
    %853 = vmatprep.subr.mxu0 0.0
    %854 = vmatpush1.msra.mxu0 0.0
    %855 = vmatprep.subr.mxu0 0.0
    %856 = vmatpush1.msra.mxu0 0.0
    %857 = vmatprep.subr.mxu0 0.0
    %858 = vmatpush1.msra.mxu0 0.0
    %859 = vmatprep.subr.mxu0 0.0
    %860 = vmatpush1.msra.mxu0 0.0
    %861 = vmatprep.subr.mxu0 0.0
    %862 = vmatpush1.msra.mxu0 0.0
    %863 = vmatprep.subr.mxu0 0.0
    %864 = vmatpush1.msra.mxu0 0.0
    %865 = vmatprep.subr.mxu0 0.0
    %866 = vmatpush1.msra.mxu0 0.0
    %867 = vmatprep.subr.mxu0 0.0
    %868 = vmatpush1.msra.mxu0 0.0
    %869 = vmatprep.subr.mxu0 0.0
    %870 = vmatpush1.msra.mxu0 0.0
    %871 = vmatprep.mubr.f32.mxu0 0.0
    %v872 = vand.u32 %v51, 4294901760
    %873 = vmatmul.mubr.f32.gmra.mrb[0].mxu0 %v872
    %v874 = vpop.f32.mrb[0].mxu0
    %v875 = vadd.f32 %v801, %v874
    %v876 = vpop.f32.mrb[0].mxu0
    %877 = vdwg.mxu0
    %878 = vmatprep.subr.mxu0 0.0
    %v879 = vand.u32 %v503, 4294901760
    %880 = vmatpush1.msra.mxu0 %v879
    %881 = vmatprep.subr.mxu0 0.0
    %882 = vmatpush1.msra.mxu0 0.0
    %883 = vmatprep.subr.mxu0 0.0
    %884 = vmatpush1.msra.mxu0 0.0
    %885 = vmatprep.subr.mxu0 0.0
    %886 = vmatpush1.msra.mxu0 0.0
    %887 = vmatprep.subr.mxu0 0.0
    %888 = vmatpush1.msra.mxu0 0.0
    %889 = vmatprep.subr.mxu0 0.0
    %890 = vmatpush1.msra.mxu0 0.0
    %891 = vmatprep.subr.mxu0 0.0
    %892 = vmatpush1.msra.mxu0 0.0
    %893 = vmatprep.subr.mxu0 0.0
    %894 = vmatpush1.msra.mxu0 0.0
    %895 = vmatprep.subr.mxu0 0.0
    %896 = vmatpush1.msra.mxu0 0.0
    %897 = vmatprep.subr.mxu0 0.0
    %898 = vmatpush1.msra.mxu0 0.0
    %899 = vmatprep.subr.mxu0 0.0
    %900 = vmatpush1.msra.mxu0 0.0
    %901 = vmatprep.subr.mxu0 0.0
    %902 = vmatpush1.msra.mxu0 0.0
    %903 = vmatprep.subr.mxu0 0.0
    %904 = vmatpush1.msra.mxu0 0.0
    %905 = vmatprep.subr.mxu0 0.0
    %906 = vmatpush1.msra.mxu0 0.0
    %907 = vmatprep.subr.mxu0 0.0
    %908 = vmatpush1.msra.mxu0 0.0
    %909 = vmatprep.subr.mxu0 0.0
    %910 = vmatpush1.msra.mxu0 0.0
    %911 = vmatprep.subr.mxu0 0.0
    %912 = vmatpush1.msra.mxu0 0.0
    %913 = vmatprep.subr.mxu0 0.0
    %914 = vmatpush1.msra.mxu0 0.0
    %915 = vmatprep.subr.mxu0 0.0
    %916 = vmatpush1.msra.mxu0 0.0
    %917 = vmatprep.subr.mxu0 0.0
    %918 = vmatpush1.msra.mxu0 0.0
    %919 = vmatprep.subr.mxu0 0.0
    %920 = vmatpush1.msra.mxu0 0.0
    %921 = vmatprep.subr.mxu0 0.0
    %922 = vmatpush1.msra.mxu0 0.0
    %923 = vmatprep.subr.mxu0 0.0
    %924 = vmatpush1.msra.mxu0 0.0
    %925 = vmatprep.subr.mxu0 0.0
    %926 = vmatpush1.msra.mxu0 0.0
    %927 = vmatprep.subr.mxu0 0.0
    %928 = vmatpush1.msra.mxu0 0.0
    %929 = vmatprep.subr.mxu0 0.0
    %930 = vmatpush1.msra.mxu0 0.0
    %931 = vmatprep.subr.mxu0 0.0
    %932 = vmatpush1.msra.mxu0 0.0
    %933 = vmatprep.subr.mxu0 0.0
    %934 = vmatpush1.msra.mxu0 0.0
    %935 = vmatprep.subr.mxu0 0.0
    %936 = vmatpush1.msra.mxu0 0.0
    %937 = vmatprep.subr.mxu0 0.0
    %938 = vmatpush1.msra.mxu0 0.0
    %939 = vmatprep.subr.mxu0 0.0
    %940 = vmatpush1.msra.mxu0 0.0
    %941 = vmatprep.subr.mxu0 0.0
    %942 = vmatpush1.msra.mxu0 0.0
    %943 = vmatprep.mubr.f32.mxu0 0.0
    %v944 = vand.u32 %v51, 4294901760
    %945 = vmatmul.mubr.f32.gmra.mrb[0].mxu0 %v944
    %v946 = vpop.f32.mrb[0].mxu0
    %v947 = vadd.f32 %v875, %v946
    %v948 = vpop.f32.mrb[0].mxu0
    %949 = vdwg.mxu0
    %v950 = vadd.f32 %v502, %v947
    %951 = vst.msk [vmem:[#allocation8] sm:$0x1] %vm500, %v950
    // Predicated region
    $region22: #{tpu_custom_call.1} parent=1 // pred_check
      _
    $region23: #{tpu_custom_call.1} parent=1 // pred_check_branch
      %953 = sbr.rel (0) target = $region25
    $region24: #{tpu_custom_call.1} parent=1 // pred_region
      %s955 = ssub.s32 16, 16
      %956 = vsyncadd [#allocation4], %s955
      %s958 = sshll.u32 [#allocation7], 4
      %s959 = int_to_ptr.vmem [resolvable:$true] %s958
      %961 = dma.vmem_to_hbm [thread:$0]  %s959, 16, %s2, [#allocation4]
    $region25: #{tpu_custom_call.1} parent=1 // pred_fallthru
      _
    // Predicated region
    $region26: #{tpu_custom_call.1} parent=1 // pred_check
      _
    $region27: #{tpu_custom_call.1} parent=1 // pred_check_branch
      %963 = sbr.rel (0) target = $region29
    $region28: #{tpu_custom_call.1} parent=1 // pred_region
      %s965 = ssub.s32 16, 16
      %966 = vsyncadd [#allocation9], %s965
      %s968 = sshll.u32 [#allocation8], 4
      %s969 = int_to_ptr.vmem [resolvable:$true] %s968
      %971 = dma.vmem_to_hbm [thread:$0]  %s969, 16, %s3, [#allocation9]
    $region29: #{tpu_custom_call.1} parent=1 // pred_fallthru
      _
    // Predicated region
    $region30: #{tpu_custom_call.1} parent=1 // pred_check
      _
    $region31: #{tpu_custom_call.1} parent=1 // pred_check_branch
      %973 = sbr.rel (0) target = $region33
    $region32: #{tpu_custom_call.1} parent=1 // pred_region
      %974 = dma.done [#allocation4], 16
    $region33: #{tpu_custom_call.1} parent=1 // pred_fallthru
      _
    // Predicated region
    $region34: #{tpu_custom_call.1} parent=1 // pred_check
      _
    $region35: #{tpu_custom_call.1} parent=1 // pred_check_branch
      %976 = sbr.rel (0) target = $region37
    $region36: #{tpu_custom_call.1} parent=1 // pred_region
      %977 = dma.done [#allocation9], 16
    $region37: #{tpu_custom_call.1} parent=1 // pred_fallthru
      _
    %978 = vsyncpa [#allocation3], 1
    %979 = vsyncpa [#allocation6], 1
    %980 = vsyncpa [#allocation4], 1
    %981 = vsyncpa [#allocation9], 1

</llo_original>
